<compile_context>
chip_gen: v7x
topology: tpu7x:2x2x1
jax: 0.10.0
libtpu: 0.0.40
codegen_flags: <defaults>
</compile_context>

<pallas_src>
import functools

import jax
import jax.numpy as jnp
from jax import lax
from jax.experimental import pallas as pl
from jax.experimental.pallas import tpu as pltpu


def _round_up(x, m):
    return ((x + m - 1) // m) * m


def _pick_tile(total, candidates):
    for c in candidates:
        if total % c == 0:
            return c
    return total  # full extent — always a legal block dim


def _dcumsum_kernel(L_ref, gpow_ref, x_ref, o_ref, carry_ref, *, precision):
    # L_ref     : VMEM (Sb, Sb)  lower-triangular gamma-power matrix (per head)
    # gpow_ref  : VMEM (Sb, 1) f32   gamma^(i+1) carry-propagation weights
    # x_ref/o_ref: VMEM (Sb, TN)     current (group, S-block, lane-tile)
    # carry_ref : VMEM (1, TN)  f32  y[last row of previous S block]
    s_idx = pl.program_id(2)

    @pl.when(s_idx == 0)
    def _reset():
        carry_ref[...] = jnp.zeros_like(carry_ref)

    y = jnp.dot(L_ref[...], x_ref[...],
                preferred_element_type=jnp.float32,
                precision=precision)                      # MXU
    y = y + gpow_ref[...] * carry_ref[...]                # f32 carry FMA (VPU)
    o_ref[...] = y.astype(o_ref.dtype)
    carry_ref[...] = y[-1:, :]                            # f32 carry for next block


def _dcumsum_grouped(xg, gamma_h, num_heads, *, dtype):
    """xg: (G, S, N), gamma_h: (H,), head of group g is g % num_heads.

    Returns (G, S, N) discounted cumsum along S.
    """
    G, S, N = xg.shape

    # ---- choose S block (and pad S so no full-extent fallback is needed) ----
    sb_pref = 128 if dtype == jnp.float32 else 256   # f32 multi-pass MXU -> 128
    s_pad = _round_up(S, 8)
    if s_pad <= sb_pref:
        Sb = s_pad
    else:
        Sb = sb_pref
        s_pad = _round_up(S, Sb)
    if s_pad != S:
        # Trailing zero rows do not affect rows < S for a left-to-right cumsum.
        xg = jnp.pad(xg, ((0, 0), (0, s_pad - S), (0, 0)))

    # ---- lane tile (mem-bound kernel: as wide as divides cleanly) ----
    TN = _pick_tile(N, (2048, 1024, 512, 256, 128))

    # ---- precompute L[h] and gpow[h] once per head, outside the kernel ----
    idx = jnp.arange(Sb)
    e = idx[:, None] - idx[None, :]                   # (Sb, Sb) exponent i-j
    mask = e >= 0
    expf = jnp.where(mask, e, 0).astype(jnp.float32)
    gam_f = gamma_h.astype(jnp.float32)               # (H,)
    L = jnp.where(mask[None], gam_f[:, None, None] ** expf[None],
                  jnp.float32(0.0))                   # (H, Sb, Sb) f32
    gpow = gam_f[:, None, None] * L[:, :, 0:1]        # (H, Sb, 1) = gamma^(i+1)

    if dtype == jnp.float32:
        mm_dtype, precision = jnp.float32, lax.Precision.HIGHEST
    else:
        mm_dtype, precision = dtype, lax.Precision.DEFAULT   # bf16 single pass
    L = L.astype(mm_dtype)

    kernel = functools.partial(_dcumsum_kernel, precision=precision)

    out = pl.pallas_call(
        kernel,
        out_shape=jax.ShapeDtypeStruct((G, s_pad, N), dtype),
        grid=(G, N // TN, s_pad // Sb),
        in_specs=[
            # L / gpow indexed only by the head -> re-DMA'd once per group.
            pl.BlockSpec((None, Sb, Sb), lambda g, n, s: (g % num_heads, 0, 0)),
            pl.BlockSpec((None, Sb, 1),  lambda g, n, s: (g % num_heads, 0, 0)),
            pl.BlockSpec((None, Sb, TN), lambda g, n, s: (g, s, n)),
        ],
        out_specs=pl.BlockSpec((None, Sb, TN), lambda g, n, s: (g, s, n)),
        scratch_shapes=[
            pltpu.VMEM((1, TN), jnp.float32),   # f32 carry across S blocks
        ],
        compiler_params=pltpu.CompilerParams(
            dimension_semantics=("parallel", "parallel", "arbitrary"),
        ),
    )(L, gpow, xg)

    return out[:, :S, :] if s_pad != S else out


def discounted_cumsum(x, gamma):
    """x: (B, H, S, D), gamma: (H,) -> (B, H, S, D)."""
    B, H, S, D = x.shape
    assert gamma.shape == (H,)
    # TODO(synk): 5-D (B, H, S, D1, D2) and (B, D, H, S) layouts of the
    # original module can reuse _dcumsum_grouped with the analogous reshapes.

    if D >= 64:
        # Native layout: (B, H, S, D) -> (B*H, S, D) is a free reshape — no
        # transpose glue; at worst masked lane stores for D not a multiple of
        # 128 (cheaper than two extra HBM transpose passes).
        xg = x.reshape(B * H, S, D)
        out = _dcumsum_grouped(xg, gamma, H, dtype=x.dtype)
        return out.reshape(B, H, S, D)
    else:
        # Very narrow D: merge B*D onto the lane axis for dense (8, 128) tiles
        # (costs two transposes, worth it only for small D).
        xg = jnp.transpose(x, (1, 2, 0, 3)).reshape(H, S, B * D)
        out = _dcumsum_grouped(xg, gamma, H, dtype=x.dtype)
        return jnp.transpose(out.reshape(H, S, B, D), (2, 0, 1, 3))


def _reference(x, gamma):
    """Pure-JAX reference using the recurrence y_s = gamma*y_{s-1} + x_s."""
    xs = jnp.moveaxis(x.astype(jnp.float32), 2, 0)   # (S, B, H, D)
    g = gamma.astype(jnp.float32)[None, :, None]     # (1, H, 1)

    def step(carry, row):
        carry = carry * g + row
        return carry, carry

    _, ys = lax.scan(step, jnp.zeros_like(xs[0]), xs)
    return jnp.moveaxis(ys, 0, 2)                    # (B, H, S, D)


if __name__ == "__main__":
    key = jax.random.PRNGKey(0)
    kx, kg, kx2, kx3 = jax.random.split(key, 4)

    gamma = jax.random.uniform(kg, (4,), dtype=jnp.float32,
                               minval=0.5, maxval=0.99)

    # Case 1: f32, D = 64 (native layout path, HIGHEST-precision f32 matmul).
    B, H, S, D = 2, 4, 16, 64
    x = jax.random.normal(kx, (B, H, S, D), dtype=jnp.float32)
    out = jax.block_until_ready(discounted_cumsum(x, gamma))
    ref = _reference(x, gamma)
    assert out.shape == (B, H, S, D)
    assert jnp.allclose(out, ref, rtol=1e-4, atol=1e-4), (
        float(jnp.max(jnp.abs(out - ref))))

    # Case 2: f32, D = 32 (< 64 -> lane-merge path) and non-multiple-of-8 S
    # (exercises the S padding path).
    x2 = jax.random.normal(kx2, (2, 4, 13, 32), dtype=jnp.float32)
    out2 = jax.block_until_ready(discounted_cumsum(x2, gamma))
    ref2 = _reference(x2, gamma)
    assert jnp.allclose(out2, ref2, rtol=1e-4, atol=1e-4), (
        float(jnp.max(jnp.abs(out2 - ref2))))

    # Case 3: bf16, D = 128 (lane-aligned fast path, bf16 MXU feed).
    x3 = jax.random.normal(kx3, (2, 4, 16, 128), dtype=jnp.float32)
    x3b = x3.astype(jnp.bfloat16)
    out3 = jax.block_until_ready(discounted_cumsum(x3b, gamma))
    ref3 = _reference(x3b, gamma)
    assert jnp.allclose(out3.astype(jnp.float32), ref3, rtol=5e-2, atol=5e-2), (
        float(jnp.max(jnp.abs(out3.astype(jnp.float32) - ref3))))

    print("KERNEL_OK")
</pallas_src>

<mosaic_0001>
module attributes {stable_mosaic.version = 11 : i64} {
  func.func @_dcumsum_kernel(%arg0: i32, %arg1: i32, %arg2: i32, %arg3: memref<1x16x16xf32, #tpu.memory_space<vmem>>, %arg4: memref<1x16x1xf32, #tpu.memory_space<vmem>>, %arg5: memref<1x16x64xf32, #tpu.memory_space<vmem>>, %arg6: memref<1x16x64xf32, #tpu.memory_space<vmem>>, %arg7: memref<1x64xf32, #tpu.memory_space<vmem>>) attributes {dimension_semantics = [#tpu.dimension_semantics<parallel>, #tpu.dimension_semantics<parallel>, #tpu.dimension_semantics<arbitrary>], iteration_bounds = array<i64: 8, 1, 1>, scalar_prefetch = 0 : i64, scratch_operands = 1 : i64, tpu.core_type = #tpu.core_type<tc>, window_params = [{transform_indices = @transform_0, window_bounds = array<i64: 1, 16, 16>}, {transform_indices = @transform_1, window_bounds = array<i64: 1, 16, 1>}, {transform_indices = @transform_2, window_bounds = array<i64: 1, 16, 64>}, {transform_indices = @transform_3, window_bounds = array<i64: 1, 16, 64>}]} {
    %c0_i32 = arith.constant 0 : i32
    %0 = arith.cmpi eq, %arg2, %c0_i32 : i32
    %1 = arith.extui %0 : i1 to i32
    %c0_i32_0 = arith.constant 0 : i32
    %2 = arith.cmpi ne, %1, %c0_i32_0 : i32
    scf.if %2 {
      %cst_16 = arith.constant 0.000000e+00 : f32
      %20 = vector.broadcast %cst_16 : f32 to vector<1x64xf32>
      %c0_17 = arith.constant 0 : index
      %c0_18 = arith.constant 0 : index
      %21 = vector.load %arg7[%c0_17, %c0_18] : memref<1x64xf32, #tpu.memory_space<vmem>>, vector<1x64xf32>
      tpu.vector_store %arg7[%c0_17, %c0_18], %20 {strides = array<i32>} : memref<1x64xf32, #tpu.memory_space<vmem>>, vector<1x64xf32>,
    } else {
    }
    %c0 = arith.constant 0 : index
    %c0_1 = arith.constant 0 : index
    %c0_2 = arith.constant 0 : index
    %3 = vector.load %arg3[%c0, %c0_1, %c0_2] : memref<1x16x16xf32, #tpu.memory_space<vmem>>, vector<1x16x16xf32>
    %4 = vector.shape_cast %3 : vector<1x16x16xf32> to vector<16x16xf32>
    %c0_3 = arith.constant 0 : index
    %c0_4 = arith.constant 0 : index
    %c0_5 = arith.constant 0 : index
    %5 = vector.load %arg5[%c0_3, %c0_4, %c0_5] : memref<1x16x64xf32, #tpu.memory_space<vmem>>, vector<1x16x64xf32>
    %6 = vector.shape_cast %5 : vector<1x16x64xf32> to vector<16x64xf32>
    %cst = arith.constant dense<0.000000e+00> : vector<16x64xf32>
    %7 = tpu.matmul %4, %6, %cst {dimension_numbers = #tpu.dot_dimension_numbers<[1], [0], [0], [1], [0, 0, 1, 1], [], []>, precision = #tpu.contract_precision<fp32>} : vector<16x16xf32>, vector<16x64xf32>, vector<16x64xf32> -> vector<16x64xf32>
    %c0_6 = arith.constant 0 : index
    %c0_7 = arith.constant 0 : index
    %c0_8 = arith.constant 0 : index
    %8 = vector.load %arg4[%c0_6, %c0_7, %c0_8] : memref<1x16x1xf32, #tpu.memory_space<vmem>>, vector<1x16x1xf32>
    %9 = vector.shape_cast %8 : vector<1x16x1xf32> to vector<16x1xf32>
    %c0_9 = arith.constant 0 : index
    %c0_10 = arith.constant 0 : index
    %10 = vector.load %arg7[%c0_9, %c0_10] : memref<1x64xf32, #tpu.memory_space<vmem>>, vector<1x64xf32>
    %11 = vector.broadcast %9 : vector<16x1xf32> to vector<16x64xf32>
    %12 = vector.broadcast %10 : vector<1x64xf32> to vector<16x64xf32>
    %13 = arith.mulf %11, %12 : vector<16x64xf32>
    %14 = arith.addf %7, %13 : vector<16x64xf32>
    %c0_11 = arith.constant 0 : index
    %c0_12 = arith.constant 0 : index
    %c0_13 = arith.constant 0 : index
    %15 = vector.load %arg6[%c0_11, %c0_12, %c0_13] : memref<1x16x64xf32, #tpu.memory_space<vmem>>, vector<1x16x64xf32>
    %16 = vector.shape_cast %15 : vector<1x16x64xf32> to vector<16x64xf32>
    %17 = vector.shape_cast %14 : vector<16x64xf32> to vector<1x16x64xf32>
    tpu.vector_store %arg6[%c0_11, %c0_12, %c0_13], %17 {strides = array<i32>} : memref<1x16x64xf32, #tpu.memory_space<vmem>>, vector<1x16x64xf32>,
    %18 = vector.extract_strided_slice %14 {offsets = [15, 0], sizes = [1, 64], strides = [1, 1]} : vector<16x64xf32> to vector<1x64xf32>
    %c0_14 = arith.constant 0 : index
    %c0_15 = arith.constant 0 : index
    %19 = vector.load %arg7[%c0_14, %c0_15] : memref<1x64xf32, #tpu.memory_space<vmem>>, vector<1x64xf32>
    tpu.vector_store %arg7[%c0_14, %c0_15], %18 {strides = array<i32>} : memref<1x64xf32, #tpu.memory_space<vmem>>, vector<1x64xf32>,
    return
  }
  func.func @transform_0(%arg0: i32, %arg1: i32, %arg2: i32) -> (i32, i32, i32) {
    %c4_i32 = arith.constant 4 : i32
    %c0_i32 = arith.constant 0 : i32
    %0 = arith.cmpi eq, %c4_i32, %c0_i32 : i32
    %c1_i32 = arith.constant 1 : i32
    %1 = arith.select %0, %c1_i32, %c4_i32 : i32
    %2 = arith.remsi %arg0, %1 : i32
    %c0_i32_0 = arith.constant 0 : i32
    %3 = arith.cmpi ne, %2, %c0_i32_0 : i32
    %c0_i32_1 = arith.constant 0 : i32
    %4 = arith.cmpi slt, %2, %c0_i32_1 : i32
    %c0_i32_2 = arith.constant 0 : i32
    %5 = arith.cmpi slt, %1, %c0_i32_2 : i32
    %6 = arith.xori %4, %5 : i1
    %7 = arith.andi %6, %3 : i1
    %8 = arith.addi %2, %1 : i32
    %9 = arith.select %7, %8, %2 : i32
    %c0_i32_3 = arith.constant 0 : i32
    %c0_i32_4 = arith.constant 0 : i32
    %c0_i32_5 = arith.constant 0 : i32
    return %9, %c0_i32_3, %c0_i32_4 : i32, i32, i32
  }
  func.func @transform_1(%arg0: i32, %arg1: i32, %arg2: i32) -> (i32, i32, i32) {
    %c4_i32 = arith.constant 4 : i32
    %c0_i32 = arith.constant 0 : i32
    %0 = arith.cmpi eq, %c4_i32, %c0_i32 : i32
    %c1_i32 = arith.constant 1 : i32
    %1 = arith.select %0, %c1_i32, %c4_i32 : i32
    %2 = arith.remsi %arg0, %1 : i32
    %c0_i32_0 = arith.constant 0 : i32
    %3 = arith.cmpi ne, %2, %c0_i32_0 : i32
    %c0_i32_1 = arith.constant 0 : i32
    %4 = arith.cmpi slt, %2, %c0_i32_1 : i32
    %c0_i32_2 = arith.constant 0 : i32
    %5 = arith.cmpi slt, %1, %c0_i32_2 : i32
    %6 = arith.xori %4, %5 : i1
    %7 = arith.andi %6, %3 : i1
    %8 = arith.addi %2, %1 : i32
    %9 = arith.select %7, %8, %2 : i32
    %c0_i32_3 = arith.constant 0 : i32
    %c0_i32_4 = arith.constant 0 : i32
    %c0_i32_5 = arith.constant 0 : i32
    return %9, %c0_i32_3, %c0_i32_4 : i32, i32, i32
  }
  func.func @transform_2(%arg0: i32, %arg1: i32, %arg2: i32) -> (i32, i32, i32) {
    %c0_i32 = arith.constant 0 : i32
    return %arg0, %arg2, %arg1 : i32, i32, i32
  }
  func.func @transform_3(%arg0: i32, %arg1: i32, %arg2: i32) -> (i32, i32, i32) {
    %c0_i32 = arith.constant 0 : i32
    return %arg0, %arg2, %arg1 : i32, i32, i32
  }
}

</mosaic_0001>

<llo_original>
// kernel: tpu_custom_call.1
$region0: #{tpu_custom_call.1}
  #allocation0 [shape = 'u32[]', space=smem, size = 0x4, offset = 0x4, fixed_abs, tag = 'smem constant byte address 0x4 - core index']
  #allocation1 [shape = 'u32[144,128]{1,0:T(1,128)}', space=vmem, size = 0x12000, scoped, tag = 'internal scratch']
  #allocation2 [shape = 'f32[1,64]{1,0:T(1,128)}', space=vmem, size = 0x200, scoped, tag = 'scratch operand']
  %s0 = inlined_call_operand.vmem [shape: f32[4,16,16], index: 0, kind: input, shape index: {}]
  %s1 = inlined_call_operand.vmem [shape: f32[4,16,1], index: 1, kind: input, shape index: {}]
  %s2 = inlined_call_operand.hbm [shape: f32[8,16,64], index: 2, kind: input, shape index: {}]
  %s3 = inlined_call_operand.hbm [shape: f32[8,16,64], index: 3, kind: output, shape index: {}]
  %s4 = sld [smem:[#allocation0]]
  $region53: #{tpu_custom_call.1} parent=0
    _
  %s6 = ssub.s32 1, %s4
  %s7 = scalar_select 0, %s6, %s4
  $region1: #{tpu_custom_call.1} parent=0
    #allocation3 [shape = 'u8[16384]{0}', space=vmem, size = 0x4000, scoped, tag = 'input window, operand 2']
    #allocation4 [shape = 's32[2]{0}', space=sflag, size = 0x8, scoped, tag = 'scoped memory for tpu_custom_call.1']
    #allocation5 [shape = 's32[2]{0}', space=sflag, size = 0x8, scoped, tag = 'scoped memory for tpu_custom_call.1']
    #allocation6 [shape = 'u8[16384]{0}', space=vmem, size = 0x4000, scoped, tag = 'output window, operand 0']
    %8 = vsyncpa [#allocation4], 0
    %s9 = scalar_lea.sflag [#allocation4], 1
    %10 = vsyncpa %s9, 0
    %11 = vsyncpa [#allocation5], 0
    %s12 = scalar_lea.sflag [#allocation5], 1
    %13 = vsyncpa %s12, 0
    loop: start=0, step=1, limit=10
    $region2: #{tpu_custom_call.1} parent=1 // loop_pre_header
      _
    $region3: #{tpu_custom_call.1} parent=1 // loop_header
      %s15 = sphi 0, %s19
      %p16 = scmp.ge.s32.totalorder %s15, 10
      %s22 = sphi 0, %s41
      %s23 = sphi 0, %s37
      %s24 = sphi 0, %s33
      %s25 = sphi 0, %s22
      %s26 = sphi 0, %s23
      %s27 = sphi 0, %s24
      %s28 = sphi 0, %s25
      %s29 = sphi 0, %s26
      %s30 = sphi 0, %s27
      %s68 = sphi 0, %s70
      %s71 = sphi 0, %s68
      %s72 = sphi 0, %s71
      %s88 = sphi 0, %s72
      %s118 = sphi 0, %s120
      %s121 = sphi 0, %s118
      %s122 = sphi 0, %s121
      %s138 = sphi 0, %s122
      %s148 = sphi 0, %s150
      %s151 = sphi 0, %s148
      %s152 = sphi 0, %s151
      %s168 = sphi 0, %s152
      %s178 = sphi 0, %s180
      %s181 = sphi 0, %s178
      %s182 = sphi 0, %s181
      %s198 = sphi 0, %s182
    $region4: #{tpu_custom_call.1} parent=1 // loop_header_branch
      %18 = sbr.rel (%p16) target = $region8
    $region5: #{tpu_custom_call.1} parent=1 // loop_body
      %s20 = ssub.s32 %s15, 1
      %s21 = ssub.s32 %s15, 2
      %s31 = sadd.s32 1, %s24
      %p32 = scmp.ge.s32.totalorder %s31, 1
      %s33 = scalar_select %p32, 0, %s31
      %s34 = sadd.s32 1, %s23
      %s35 = scalar_select %p32, %s34, %s23
      %p36 = scmp.ge.s32.totalorder %s35, 1
      %s37 = scalar_select %p36, 0, %s35
      %s38 = sadd.s32 1, %s22
      %s39 = scalar_select %p36, %s38, %s22
      %p40 = scmp.ge.s32.totalorder %s39, 8
      %s41 = scalar_select %p40, 0, %s39
      %p42 = scmp.lt.s32.totalorder %s22, 0
      %s43 = ssub.s32 0, %s22
      %s44 = scalar_select %p42, %s43, %s22
      %s45 = sand.u32 %s44, 3
      %s46 = ssub.s32 0, %s45
      %s47 = scalar_select %p42, %s46, %s45
      %p48 = scmp.ne.s32.totalorder %s47, 0
      %p49 = scmp.lt.s32.totalorder %s47, 0
      %p50 = pnand %p49, %p48
      %p51 = pneg %p50
      %s52 = sadd.s32 %s47, 4
      %s53 = scalar_select %p51, %s52, %s47
      %p54 = scmp.lt.s32.totalorder %s41, 0
      %s55 = ssub.s32 0, %s41
      %s56 = scalar_select %p54, %s55, %s41
      %s57 = sand.u32 %s56, 3
      %s58 = ssub.s32 0, %s57
      %s59 = scalar_select %p54, %s58, %s57
      %p60 = scmp.ne.s32.totalorder %s59, 0
      %p61 = scmp.lt.s32.totalorder %s59, 0
      %p62 = pnand %p61, %p60
      %p63 = pneg %p62
      %s64 = sadd.s32 %s59, 4
      %s65 = scalar_select %p63, %s64, %s59
      %s66 = ssub.s32 %s53, %s65
      %p67 = scmp.eq.s32.totalorder %s66, 0
      %s69 = sadd.s32 %s68, 1
      %s70 = scalar_select %p67, %s68, %s69
      %p73 = pneg %p67
      %p74 = scmp.eq.s32.totalorder %s15, 7
      %p75 = por %p73, %p74
      %p76 = scmp.ne.s32.totalorder %s68, %s71
      %p77 = scmp.eq.s32.totalorder %s15, 0
      %p78 = por %p76, %p77
      %p79 = scmp.ne.s32.totalorder %s68, %s71
      %p80 = scmp.eq.s32.totalorder %s20, 7
      %p81 = por %p79, %p80
      %p82 = scmp.ne.s32.totalorder %s71, %s72
      %p83 = scmp.eq.s32.totalorder %s20, 0
      %p84 = por %p82, %p83
      %p85 = scmp.ne.s32.totalorder %s71, %s72
      %p86 = scmp.eq.s32.totalorder %s21, 7
      %p87 = por %p85, %p86
      %p89 = scmp.ne.s32.totalorder %s72, %s88
      %p90 = scmp.eq.s32.totalorder %s21, 0
      %p91 = por %p89, %p90
      %p92 = scmp.lt.s32.totalorder %s22, 0
      %s93 = ssub.s32 0, %s22
      %s94 = scalar_select %p92, %s93, %s22
      %s95 = sand.u32 %s94, 3
      %s96 = ssub.s32 0, %s95
      %s97 = scalar_select %p92, %s96, %s95
      %p98 = scmp.ne.s32.totalorder %s97, 0
      %p99 = scmp.lt.s32.totalorder %s97, 0
      %p100 = pnand %p99, %p98
      %p101 = pneg %p100
      %s102 = sadd.s32 %s97, 4
      %s103 = scalar_select %p101, %s102, %s97
      %p104 = scmp.lt.s32.totalorder %s41, 0
      %s105 = ssub.s32 0, %s41
      %s106 = scalar_select %p104, %s105, %s41
      %s107 = sand.u32 %s106, 3
      %s108 = ssub.s32 0, %s107
      %s109 = scalar_select %p104, %s108, %s107
      %p110 = scmp.ne.s32.totalorder %s109, 0
      %p111 = scmp.lt.s32.totalorder %s109, 0
      %p112 = pnand %p111, %p110
      %p113 = pneg %p112
      %s114 = sadd.s32 %s109, 4
      %s115 = scalar_select %p113, %s114, %s109
      %s116 = ssub.s32 %s103, %s115
      %p117 = scmp.eq.s32.totalorder %s116, 0
      %s119 = sadd.s32 %s118, 1
      %s120 = scalar_select %p117, %s118, %s119
      %p123 = pneg %p117
      %p124 = scmp.eq.s32.totalorder %s15, 7
      %p125 = por %p123, %p124
      %p126 = scmp.ne.s32.totalorder %s118, %s121
      %p127 = scmp.eq.s32.totalorder %s15, 0
      %p128 = por %p126, %p127
      %p129 = scmp.ne.s32.totalorder %s118, %s121
      %p130 = scmp.eq.s32.totalorder %s20, 7
      %p131 = por %p129, %p130
      %p132 = scmp.ne.s32.totalorder %s121, %s122
      %p133 = scmp.eq.s32.totalorder %s20, 0
      %p134 = por %p132, %p133
      %p135 = scmp.ne.s32.totalorder %s121, %s122
      %p136 = scmp.eq.s32.totalorder %s21, 7
      %p137 = por %p135, %p136
      %p139 = scmp.ne.s32.totalorder %s122, %s138
      %p140 = scmp.eq.s32.totalorder %s21, 0
      %p141 = por %p139, %p140
      %s142 = ssub.s32 %s22, %s41
      %s143 = ssub.s32 %s24, %s33
      %s144 = sor.u32 %s142, %s143
      %s145 = ssub.s32 %s23, %s37
      %s146 = sor.u32 %s144, %s145
      %p147 = scmp.eq.s32.totalorder %s146, 0
      %s149 = sadd.s32 %s148, 1
      %s150 = scalar_select %p147, %s148, %s149
      %p153 = pneg %p147
      %p154 = scmp.eq.s32.totalorder %s15, 7
      %p155 = por %p153, %p154
      %p156 = scmp.ne.s32.totalorder %s148, %s151
      %p157 = scmp.eq.s32.totalorder %s15, 0
      %p158 = por %p156, %p157
      %p159 = scmp.ne.s32.totalorder %s148, %s151
      %p160 = scmp.eq.s32.totalorder %s20, 7
      %p161 = por %p159, %p160
      %p162 = scmp.ne.s32.totalorder %s151, %s152
      %p163 = scmp.eq.s32.totalorder %s20, 0
      %p164 = por %p162, %p163
      %p165 = scmp.ne.s32.totalorder %s151, %s152
      %p166 = scmp.eq.s32.totalorder %s21, 7
      %p167 = por %p165, %p166
      %p169 = scmp.ne.s32.totalorder %s152, %s168
      %p170 = scmp.eq.s32.totalorder %s21, 0
      %p171 = por %p169, %p170
      %s172 = ssub.s32 %s22, %s41
      %s173 = ssub.s32 %s24, %s33
      %s174 = sor.u32 %s172, %s173
      %s175 = ssub.s32 %s23, %s37
      %s176 = sor.u32 %s174, %s175
      %p177 = scmp.eq.s32.totalorder %s176, 0
      %s179 = sadd.s32 %s178, 1
      %s180 = scalar_select %p177, %s178, %s179
      %p183 = pneg %p177
      %p184 = scmp.eq.s32.totalorder %s15, 7
      %p185 = por %p183, %p184
      %p186 = scmp.ne.s32.totalorder %s178, %s181
      %p187 = scmp.eq.s32.totalorder %s15, 0
      %p188 = por %p186, %p187
      %p189 = scmp.ne.s32.totalorder %s178, %s181
      %p190 = scmp.eq.s32.totalorder %s20, 7
      %p191 = por %p189, %p190
      %p192 = scmp.ne.s32.totalorder %s181, %s182
      %p193 = scmp.eq.s32.totalorder %s20, 0
      %p194 = por %p192, %p193
      %p195 = scmp.ne.s32.totalorder %s181, %s182
      %p196 = scmp.eq.s32.totalorder %s21, 7
      %p197 = por %p195, %p196
      %p199 = scmp.ne.s32.totalorder %s182, %s198
      %p200 = scmp.eq.s32.totalorder %s21, 0
      %p201 = por %p199, %p200
      %p202 = scmp.le.s32.totalorder 1, %s15
      %p203 = scmp.lt.s32.totalorder %s15, 9
      %p204 = pnand %p202, %p203
      %p205 = pneg %p204
      // Predicated region
      $region9: #{tpu_custom_call.1} parent=5 // pred_check
        _
      $region10: #{tpu_custom_call.1} parent=5 // pred_check_branch
        %207 = sbr.rel (%p204) target = $region12
      $region11: #{tpu_custom_call.1} parent=5 // pred_region
        %s208 = ssub.s32 %s15, 1
      $region12: #{tpu_custom_call.1} parent=5 // pred_fallthru
        _
      %p209 = scmp.lt.s32.totalorder %s15, 8
      // Predicated region
      $region13: #{tpu_custom_call.1} parent=5 // pred_check
        %p210 = pneg %p209
      $region14: #{tpu_custom_call.1} parent=5 // pred_check_branch
        %212 = sbr.rel (%p210) target = $region16
      $region15: #{tpu_custom_call.1} parent=5 // pred_region
        // Predicated region
        $region17: #{tpu_custom_call.1} parent=15 // pred_check
          %p213 = pneg %p78
        $region18: #{tpu_custom_call.1} parent=15 // pred_check_branch
          %215 = sbr.rel (%p213) target = $region20
        $region19: #{tpu_custom_call.1} parent=15 // pred_region
          %p216 = scmp.lt.s32.totalorder %s22, 0
          %s217 = ssub.s32 0, %s22
          %s218 = scalar_select %p216, %s217, %s22
          %s219 = sand.u32 %s218, 3
          %s220 = ssub.s32 0, %s219
          %s221 = scalar_select %p216, %s220, %s219
          %p222 = scmp.ne.s32.totalorder %s221, 0
          %p223 = scmp.lt.s32.totalorder %s221, 0
          %p224 = pnand %p223, %p222
          %p225 = pneg %p224
          %s226 = sadd.s32 %s221, 4
          %s227 = scalar_select %p225, %s226, %s221
          %p228 = scmp.lt.s32.totalorder %s227, 3
          %s229 = scalar_select %p228, %s227, 3
          %s230 = smul.addr %s229, 2
          %s231 = smul.addr %s230, 8
          %s232 = scalar_lea.vmem %s0, %s231
          %p233 = scmp.lt.s32.totalorder %s22, 0
          %s234 = ssub.s32 0, %s22
          %s235 = scalar_select %p233, %s234, %s22
          %s236 = sand.u32 %s235, 3
          %s237 = ssub.s32 0, %s236
          %s238 = scalar_select %p233, %s237, %s236
          %p239 = scmp.ne.s32.totalorder %s238, 0
          %p240 = scmp.lt.s32.totalorder %s238, 0
          %p241 = pnand %p240, %p239
          %p242 = pneg %p241
          %s243 = sadd.s32 %s238, 4
          %s244 = scalar_select %p242, %s243, %s238
        $region20: #{tpu_custom_call.1} parent=15 // pred_fallthru
          _
        // Predicated region
        $region21: #{tpu_custom_call.1} parent=15 // pred_check
          %p245 = pneg %p128
        $region22: #{tpu_custom_call.1} parent=15 // pred_check_branch
          %247 = sbr.rel (%p245) target = $region24
        $region23: #{tpu_custom_call.1} parent=15 // pred_region
          %p248 = scmp.lt.s32.totalorder %s22, 0
          %s249 = ssub.s32 0, %s22
          %s250 = scalar_select %p248, %s249, %s22
          %s251 = sand.u32 %s250, 3
          %s252 = ssub.s32 0, %s251
          %s253 = scalar_select %p248, %s252, %s251
          %p254 = scmp.ne.s32.totalorder %s253, 0
          %p255 = scmp.lt.s32.totalorder %s253, 0
          %p256 = pnand %p255, %p254
          %p257 = pneg %p256
          %s258 = sadd.s32 %s253, 4
          %s259 = scalar_select %p257, %s258, %s253
          %p260 = scmp.lt.s32.totalorder %s259, 3
          %s261 = scalar_select %p260, %s259, 3
          %s262 = smul.addr %s261, 2
          %s263 = smul.addr %s262, 8
          %s264 = scalar_lea.vmem %s1, %s263
          %p265 = scmp.lt.s32.totalorder %s22, 0
          %s266 = ssub.s32 0, %s22
          %s267 = scalar_select %p265, %s266, %s22
          %s268 = sand.u32 %s267, 3
          %s269 = ssub.s32 0, %s268
          %s270 = scalar_select %p265, %s269, %s268
          %p271 = scmp.ne.s32.totalorder %s270, 0
          %p272 = scmp.lt.s32.totalorder %s270, 0
          %p273 = pnand %p272, %p271
          %p274 = pneg %p273
          %s275 = sadd.s32 %s270, 4
          %s276 = scalar_select %p274, %s275, %s270
        $region24: #{tpu_custom_call.1} parent=15 // pred_fallthru
          _
        // Predicated region
        $region25: #{tpu_custom_call.1} parent=15 // pred_check
          %p277 = pneg %p158
        $region26: #{tpu_custom_call.1} parent=15 // pred_check_branch
          %279 = sbr.rel (%p277) target = $region28
        $region27: #{tpu_custom_call.1} parent=15 // pred_region
          %s280 = sand.u32 %s148, 1
          %s281 = scalar_lea.sflag [#allocation4], %s280
          %s282 = sand.u32 %s148, 1
          %s283 = smul.addr %s282, 16
          %s284 = scalar_lea.vmem [#allocation3], %s283
          %s285 = smul.u32 2, %s24
          %s287 = ssub.s32 256, 256
          %288 = vsyncadd %s281, %s287
          %s289 = sadd.s32 %s23, %s285
          %s290 = smul.addr %s22, 2
          %s291 = sadd.s32 %s289, %s290
          %s292 = smul.addr %s291, 128
          %s293 = scalar_lea.hbm %s2, %s292
          %s294 = sshll.u32 %s284, 4
          %s295 = int_to_ptr.vmem [resolvable:$true] %s294
          %300 = dma.hbm_to_vmem [thread:$0]  %s293, 256, %s295, %s281, 128, 128, 8
        $region28: #{tpu_custom_call.1} parent=15 // pred_fallthru
          _
      $region16: #{tpu_custom_call.1} parent=5 // pred_fallthru
        _
      %p301 = scmp.le.s32.totalorder 1, %s15
      %p302 = scmp.lt.s32.totalorder %s15, 9
      %p303 = pnand %p301, %p302
      %p304 = pneg %p303
      // Predicated region
      $region29: #{tpu_custom_call.1} parent=5 // pred_check
        _
      $region30: #{tpu_custom_call.1} parent=5 // pred_check_branch
        %306 = sbr.rel (%p303) target = $region32
      $region31: #{tpu_custom_call.1} parent=5 // pred_region
        %s307 = ssub.s32 %s15, 1
        %s308 = sand.u32 %s151, 1
        %s309 = scalar_lea.sflag [#allocation4], %s308
        %s310 = sand.u32 %s151, 1
        %s311 = smul.addr %s310, 16
        %s312 = scalar_lea.vmem [#allocation3], %s311
        // Predicated region
        $region33: #{tpu_custom_call.1} parent=31 // pred_check
          %p313 = pneg %p164
        $region34: #{tpu_custom_call.1} parent=31 // pred_check_branch
          %315 = sbr.rel (%p313) target = $region36
        $region35: #{tpu_custom_call.1} parent=31 // pred_region
          %316 = dma.done %s309, 256
        $region36: #{tpu_custom_call.1} parent=31 // pred_fallthru
          _
        %p317 = scmp.lt.s32.totalorder %s25, 0
        %s318 = ssub.s32 0, %s25
        %s319 = scalar_select %p317, %s318, %s25
        %s320 = sand.u32 %s319, 3
        %s321 = ssub.s32 0, %s320
        %s322 = scalar_select %p317, %s321, %s320
        %p323 = scmp.ne.s32.totalorder %s322, 0
        %p324 = scmp.lt.s32.totalorder %s322, 0
        %p325 = pnand %p324, %p323
        %p326 = pneg %p325
        %s327 = sadd.s32 %s322, 4
        %s328 = scalar_select %p326, %s327, %s322
        %p329 = scmp.lt.s32.totalorder %s328, 3
        %s330 = scalar_select %p329, %s328, 3
        %s331 = smul.addr %s330, 2
        %s332 = smul.addr %s331, 8
        %s333 = scalar_lea.vmem %s0, %s332
        %p334 = pneg %p84
        %p335 = pneg %p81
        %p336 = scmp.lt.s32.totalorder %s25, 0
        %s337 = ssub.s32 0, %s25
        %s338 = scalar_select %p336, %s337, %s25
        %s339 = sand.u32 %s338, 3
        %s340 = ssub.s32 0, %s339
        %s341 = scalar_select %p336, %s340, %s339
        %p342 = scmp.ne.s32.totalorder %s341, 0
        %p343 = scmp.lt.s32.totalorder %s341, 0
        %p344 = pnand %p343, %p342
        %p345 = pneg %p344
        %s346 = sadd.s32 %s341, 4
        %s347 = scalar_select %p345, %s346, %s341
        %p348 = scmp.lt.s32.totalorder %s347, 3
        %s349 = scalar_select %p348, %s347, 3
        %s350 = smul.addr %s349, 2
        %s351 = smul.addr %s350, 8
        %s352 = scalar_lea.vmem %s1, %s351
        %p353 = pneg %p134
        %p354 = pneg %p131
        %s355 = sand.u32 %s151, 1
        %s356 = scalar_lea.sflag [#allocation4], %s355
        %s357 = sand.u32 %s151, 1
        %s358 = smul.addr %s357, 16
        %s359 = scalar_lea.vmem [#allocation3], %s358
        %p360 = pneg %p164
        %p361 = pneg %p161
        %p362 = pneg %p194
        %p363 = pneg %p191
        %s364 = sand.u32 %s181, 1
        %s365 = scalar_lea.sflag [#allocation5], %s364
        %s366 = sand.u32 %s181, 1
        %s367 = smul.addr %s366, 16
        %s368 = scalar_lea.vmem [#allocation6], %s367
        %p369 = scmp.lt.s32.totalorder %s25, 0
        %s370 = ssub.s32 0, %s25
        %s371 = scalar_select %p369, %s370, %s25
        %s372 = sand.u32 %s371, 3
        %s373 = ssub.s32 0, %s372
        %s374 = scalar_select %p369, %s373, %s372
        %p375 = scmp.ne.s32.totalorder %s374, 0
        %p376 = scmp.lt.s32.totalorder %s374, 0
        %p377 = pnand %p376, %p375
        %p378 = pneg %p377
        %s379 = sadd.s32 %s374, 4
        %s380 = scalar_select %p378, %s379, %s374
        %p381 = scmp.lt.s32.totalorder %s380, 3
        %s382 = scalar_select %p381, %s380, 3
        %s383 = smul.addr %s382, 2
        %s384 = smul.addr %s383, 8
        %s385 = scalar_lea.vmem %s0, %s384
        %p386 = scmp.lt.s32.totalorder %s25, 0
        %s387 = ssub.s32 0, %s25
        %s388 = scalar_select %p386, %s387, %s25
        %s389 = sand.u32 %s388, 3
        %s390 = ssub.s32 0, %s389
        %s391 = scalar_select %p386, %s390, %s389
        %p392 = scmp.ne.s32.totalorder %s391, 0
        %p393 = scmp.lt.s32.totalorder %s391, 0
        %p394 = pnand %p393, %p392
        %p395 = pneg %p394
        %s396 = sadd.s32 %s391, 4
        %s397 = scalar_select %p395, %s396, %s391
        %p398 = scmp.lt.s32.totalorder %s25, 0
        %s399 = ssub.s32 0, %s25
        %s400 = scalar_select %p398, %s399, %s25
        %s401 = sand.u32 %s400, 3
        %s402 = ssub.s32 0, %s401
        %s403 = scalar_select %p398, %s402, %s401
        %p404 = scmp.ne.s32.totalorder %s403, 0
        %p405 = scmp.lt.s32.totalorder %s403, 0
        %p406 = pnand %p405, %p404
        %p407 = pneg %p406
        %s408 = sadd.s32 %s403, 4
        %s409 = scalar_select %p407, %s408, %s403
        %p410 = scmp.lt.s32.totalorder %s409, 3
        %s411 = scalar_select %p410, %s409, 3
        %s412 = smul.addr %s411, 2
        %s413 = smul.addr %s412, 8
        %s414 = scalar_lea.vmem %s1, %s413
        %p415 = scmp.lt.s32.totalorder %s25, 0
        %s416 = ssub.s32 0, %s25
        %s417 = scalar_select %p415, %s416, %s25
        %s418 = sand.u32 %s417, 3
        %s419 = ssub.s32 0, %s418
        %s420 = scalar_select %p415, %s419, %s418
        %p421 = scmp.ne.s32.totalorder %s420, 0
        %p422 = scmp.lt.s32.totalorder %s420, 0
        %p423 = pnand %p422, %p421
        %p424 = pneg %p423
        %s425 = sadd.s32 %s420, 4
        %s426 = scalar_select %p424, %s425, %s420
        %s427 = smul.u32 2, %s27
        %s428 = smul.u32 2, %s27
        %p429 = scmp.eq.s32.totalorder %s27, 0
        // Predicated region
        $region37: #{tpu_custom_call.1} parent=31 // pred_check
          %p430 = pneg %p429
        $region38: #{tpu_custom_call.1} parent=31 // pred_check_branch
          %432 = sbr.rel (%p430) target = $region40
        $region39: #{tpu_custom_call.1} parent=31 // pred_region
          %vm433 = vcmask 516096
          %434 = vst.msk [vmem:[#allocation2] sm:$0x1] %vm433, 0.0
        $region40: #{tpu_custom_call.1} parent=31 // pred_fallthru
          _
        %v435 = vld [vmem:[%s385] sm:$0xff]
        %v436 = vld [vmem:[%s385 + $0x8] sm:$0xff]
        %v437 = vld [vmem:[%s312] sm:$0xff]
        %v438 = vld [vmem:[%s312 + $0x8] sm:$0xff]
        %v439 = vld [vmem:[%s414] sm:$0xff]
        %v440 = vld [vmem:[%s414 + $0x8] sm:$0xff]
        %v441 = vld [vmem:[#allocation2] sm:$0x1]
        %443 = vset.pattern.permute.xlu0 0
        %444 = vperm.xlu0 %443, %v439
        %v445 = vpop.permute.xlu0 %444
        %448 = vset.pattern.permute.xlu0 0
        %449 = vperm.xlu0 %448, %v440
        %v450 = vpop.permute.xlu0 %449
        %v453 = vlaneseq
        %v454 = vshrl.u32 %v453, 7
        %v455 = vsub.s32 0, %v454
        %v456 = vrot.slane %v441, %v455
        %v458 = vmul.f32 %v445, %v456
        %v459 = vmul.f32 %v450, %v456
        %vm460 = vcmask 130048
        %v462 = vsel %vm460, %v435, 0
        %v465 = vsel %vm460, %v436, 0
        %467 = vmatprep.subr.mxu0 0.0
        %v468 = vand.u32 %v437, 4294901760
        %469 = vmatpush1.msra.mxu0 %v468
        %470 = vmatprep.subr.mxu0 0.0
        %v471 = vand.u32 %v438, 4294901760
        %472 = vmatpush1.msra.mxu0 %v471
        %473 = vmatprep.subr.mxu0 0.0
        %474 = vmatpush1.msra.mxu0 0.0
        %475 = vmatprep.subr.mxu0 0.0
        %476 = vmatpush1.msra.mxu0 0.0
        %477 = vmatprep.subr.mxu0 0.0
        %478 = vmatpush1.msra.mxu0 0.0
        %479 = vmatprep.subr.mxu0 0.0
        %480 = vmatpush1.msra.mxu0 0.0
        %481 = vmatprep.subr.mxu0 0.0
        %482 = vmatpush1.msra.mxu0 0.0
        %483 = vmatprep.subr.mxu0 0.0
        %484 = vmatpush1.msra.mxu0 0.0
        %485 = vmatprep.subr.mxu0 0.0
        %486 = vmatpush1.msra.mxu0 0.0
        %487 = vmatprep.subr.mxu0 0.0
        %488 = vmatpush1.msra.mxu0 0.0
        %489 = vmatprep.subr.mxu0 0.0
        %490 = vmatpush1.msra.mxu0 0.0
        %491 = vmatprep.subr.mxu0 0.0
        %492 = vmatpush1.msra.mxu0 0.0
        %493 = vmatprep.subr.mxu0 0.0
        %494 = vmatpush1.msra.mxu0 0.0
        %495 = vmatprep.subr.mxu0 0.0
        %496 = vmatpush1.msra.mxu0 0.0
        %497 = vmatprep.subr.mxu0 0.0
        %498 = vmatpush1.msra.mxu0 0.0
        %499 = vmatprep.subr.mxu0 0.0
        %500 = vmatpush1.msra.mxu0 0.0
        %501 = vmatprep.subr.mxu0 0.0
        %502 = vmatpush1.msra.mxu0 0.0
        %503 = vmatprep.subr.mxu0 0.0
        %504 = vmatpush1.msra.mxu0 0.0
        %505 = vmatprep.subr.mxu0 0.0
        %506 = vmatpush1.msra.mxu0 0.0
        %507 = vmatprep.subr.mxu0 0.0
        %508 = vmatpush1.msra.mxu0 0.0
        %509 = vmatprep.subr.mxu0 0.0
        %510 = vmatpush1.msra.mxu0 0.0
        %511 = vmatprep.subr.mxu0 0.0
        %512 = vmatpush1.msra.mxu0 0.0
        %513 = vmatprep.subr.mxu0 0.0
        %514 = vmatpush1.msra.mxu0 0.0
        %515 = vmatprep.subr.mxu0 0.0
        %516 = vmatpush1.msra.mxu0 0.0
        %517 = vmatprep.subr.mxu0 0.0
        %518 = vmatpush1.msra.mxu0 0.0
        %519 = vmatprep.subr.mxu0 0.0
        %520 = vmatpush1.msra.mxu0 0.0
        %521 = vmatprep.subr.mxu0 0.0
        %522 = vmatpush1.msra.mxu0 0.0
        %523 = vmatprep.subr.mxu0 0.0
        %524 = vmatpush1.msra.mxu0 0.0
        %525 = vmatprep.subr.mxu0 0.0
        %526 = vmatpush1.msra.mxu0 0.0
        %527 = vmatprep.subr.mxu0 0.0
        %528 = vmatpush1.msra.mxu0 0.0
        %529 = vmatprep.subr.mxu0 0.0
        %530 = vmatpush1.msra.mxu0 0.0
        %531 = vmatprep.subr.mxu0 0.0
        %532 = vmatpush1.msra.mxu0 0.0
        %533 = vmatprep.mubr.f32.mxu0 0.0
        %v534 = vand.u32 %v462, 4294901760
        %v535 = vsub.f32 %v462, %v534
        %v536 = vand.u32 %v535, 4294901760
        %v537 = vsub.f32 %v535, %v536
        %v538 = vand.u32 %v537, 4294901760
        %539 = vmatmul.mubr.f32.gmra.mrb[0].mxu0 %v538
        %v540 = vpop.f32.mrb[0].mxu0
        %v541 = vadd.f32 %v458, %v540
        %v542 = vpop.f32.mrb[0].mxu0
        %543 = vmatprep.mubr.f32.mxu0 0.0
        %v544 = vand.u32 %v465, 4294901760
        %v545 = vsub.f32 %v465, %v544
        %v546 = vand.u32 %v545, 4294901760
        %v547 = vsub.f32 %v545, %v546
        %v548 = vand.u32 %v547, 4294901760
        %549 = vmatmul.mubr.f32.gmra.mrb[0].mxu0 %v548
        %v550 = vpop.f32.mrb[0].mxu0
        %v551 = vadd.f32 %v459, %v550
        %v552 = vpop.f32.mrb[0].mxu0
        %553 = vdwg.mxu0
        %554 = vmatprep.subr.mxu0 0.0
        %v555 = vand.u32 %v437, 4294901760
        %v556 = vsub.f32 %v437, %v555
        %v557 = vand.u32 %v556, 4294901760
        %v558 = vsub.f32 %v556, %v557
        %v559 = vand.u32 %v558, 4294901760
        %560 = vmatpush1.msra.mxu0 %v559
        %561 = vmatprep.subr.mxu0 0.0
        %v562 = vand.u32 %v438, 4294901760
        %v563 = vsub.f32 %v438, %v562
        %v564 = vand.u32 %v563, 4294901760
        %v565 = vsub.f32 %v563, %v564
        %v566 = vand.u32 %v565, 4294901760
        %567 = vmatpush1.msra.mxu0 %v566
        %568 = vmatprep.subr.mxu0 0.0
        %569 = vmatpush1.msra.mxu0 0.0
        %570 = vmatprep.subr.mxu0 0.0
        %571 = vmatpush1.msra.mxu0 0.0
        %572 = vmatprep.subr.mxu0 0.0
        %573 = vmatpush1.msra.mxu0 0.0
        %574 = vmatprep.subr.mxu0 0.0
        %575 = vmatpush1.msra.mxu0 0.0
        %576 = vmatprep.subr.mxu0 0.0
        %577 = vmatpush1.msra.mxu0 0.0
        %578 = vmatprep.subr.mxu0 0.0
        %579 = vmatpush1.msra.mxu0 0.0
        %580 = vmatprep.subr.mxu0 0.0
        %581 = vmatpush1.msra.mxu0 0.0
        %582 = vmatprep.subr.mxu0 0.0
        %583 = vmatpush1.msra.mxu0 0.0
        %584 = vmatprep.subr.mxu0 0.0
        %585 = vmatpush1.msra.mxu0 0.0
        %586 = vmatprep.subr.mxu0 0.0
        %587 = vmatpush1.msra.mxu0 0.0
        %588 = vmatprep.subr.mxu0 0.0
        %589 = vmatpush1.msra.mxu0 0.0
        %590 = vmatprep.subr.mxu0 0.0
        %591 = vmatpush1.msra.mxu0 0.0
        %592 = vmatprep.subr.mxu0 0.0
        %593 = vmatpush1.msra.mxu0 0.0
        %594 = vmatprep.subr.mxu0 0.0
        %595 = vmatpush1.msra.mxu0 0.0
        %596 = vmatprep.subr.mxu0 0.0
        %597 = vmatpush1.msra.mxu0 0.0
        %598 = vmatprep.subr.mxu0 0.0
        %599 = vmatpush1.msra.mxu0 0.0
        %600 = vmatprep.subr.mxu0 0.0
        %601 = vmatpush1.msra.mxu0 0.0
        %602 = vmatprep.subr.mxu0 0.0
        %603 = vmatpush1.msra.mxu0 0.0
        %604 = vmatprep.subr.mxu0 0.0
        %605 = vmatpush1.msra.mxu0 0.0
        %606 = vmatprep.subr.mxu0 0.0
        %607 = vmatpush1.msra.mxu0 0.0
        %608 = vmatprep.subr.mxu0 0.0
        %609 = vmatpush1.msra.mxu0 0.0
        %610 = vmatprep.subr.mxu0 0.0
        %611 = vmatpush1.msra.mxu0 0.0
        %612 = vmatprep.subr.mxu0 0.0
        %613 = vmatpush1.msra.mxu0 0.0
        %614 = vmatprep.subr.mxu0 0.0
        %615 = vmatpush1.msra.mxu0 0.0
        %616 = vmatprep.subr.mxu0 0.0
        %617 = vmatpush1.msra.mxu0 0.0
        %618 = vmatprep.subr.mxu0 0.0
        %619 = vmatpush1.msra.mxu0 0.0
        %620 = vmatprep.subr.mxu0 0.0
        %621 = vmatpush1.msra.mxu0 0.0
        %622 = vmatprep.subr.mxu0 0.0
        %623 = vmatpush1.msra.mxu0 0.0
        %624 = vmatprep.subr.mxu0 0.0
        %625 = vmatpush1.msra.mxu0 0.0
        %626 = vmatprep.subr.mxu0 0.0
        %627 = vmatpush1.msra.mxu0 0.0
        %628 = vmatprep.mubr.f32.mxu0 0.0
        %v629 = vand.u32 %v462, 4294901760
        %630 = vmatmul.mubr.f32.gmra.mrb[0].mxu0 %v629
        %v631 = vpop.f32.mrb[0].mxu0
        %v632 = vadd.f32 %v541, %v631
        %v633 = vpop.f32.mrb[0].mxu0
        %634 = vmatprep.mubr.f32.mxu0 0.0
        %v635 = vand.u32 %v465, 4294901760
        %636 = vmatmul.mubr.f32.gmra.mrb[0].mxu0 %v635
        %v637 = vpop.f32.mrb[0].mxu0
        %v638 = vadd.f32 %v551, %v637
        %v639 = vpop.f32.mrb[0].mxu0
        %640 = vdwg.mxu0
        %641 = vmatprep.subr.mxu0 0.0
        %v642 = vand.u32 %v437, 4294901760
        %v643 = vsub.f32 %v437, %v642
        %644 = vmatpush1.msra.mxu0 %v643
        %645 = vmatprep.subr.mxu0 0.0
        %v646 = vand.u32 %v438, 4294901760
        %v647 = vsub.f32 %v438, %v646
        %648 = vmatpush1.msra.mxu0 %v647
        %649 = vmatprep.subr.mxu0 0.0
        %650 = vmatpush1.msra.mxu0 0.0
        %651 = vmatprep.subr.mxu0 0.0
        %652 = vmatpush1.msra.mxu0 0.0
        %653 = vmatprep.subr.mxu0 0.0
        %654 = vmatpush1.msra.mxu0 0.0
        %655 = vmatprep.subr.mxu0 0.0
        %656 = vmatpush1.msra.mxu0 0.0
        %657 = vmatprep.subr.mxu0 0.0
        %658 = vmatpush1.msra.mxu0 0.0
        %659 = vmatprep.subr.mxu0 0.0
        %660 = vmatpush1.msra.mxu0 0.0
        %661 = vmatprep.subr.mxu0 0.0
        %662 = vmatpush1.msra.mxu0 0.0
        %663 = vmatprep.subr.mxu0 0.0
        %664 = vmatpush1.msra.mxu0 0.0
        %665 = vmatprep.subr.mxu0 0.0
        %666 = vmatpush1.msra.mxu0 0.0
        %667 = vmatprep.subr.mxu0 0.0
        %668 = vmatpush1.msra.mxu0 0.0
        %669 = vmatprep.subr.mxu0 0.0
        %670 = vmatpush1.msra.mxu0 0.0
        %671 = vmatprep.subr.mxu0 0.0
        %672 = vmatpush1.msra.mxu0 0.0
        %673 = vmatprep.subr.mxu0 0.0
        %674 = vmatpush1.msra.mxu0 0.0
        %675 = vmatprep.subr.mxu0 0.0
        %676 = vmatpush1.msra.mxu0 0.0
        %677 = vmatprep.subr.mxu0 0.0
        %678 = vmatpush1.msra.mxu0 0.0
        %679 = vmatprep.subr.mxu0 0.0
        %680 = vmatpush1.msra.mxu0 0.0
        %681 = vmatprep.subr.mxu0 0.0
        %682 = vmatpush1.msra.mxu0 0.0
        %683 = vmatprep.subr.mxu0 0.0
        %684 = vmatpush1.msra.mxu0 0.0
        %685 = vmatprep.subr.mxu0 0.0
        %686 = vmatpush1.msra.mxu0 0.0
        %687 = vmatprep.subr.mxu0 0.0
        %688 = vmatpush1.msra.mxu0 0.0
        %689 = vmatprep.subr.mxu0 0.0
        %690 = vmatpush1.msra.mxu0 0.0
        %691 = vmatprep.subr.mxu0 0.0
        %692 = vmatpush1.msra.mxu0 0.0
        %693 = vmatprep.subr.mxu0 0.0
        %694 = vmatpush1.msra.mxu0 0.0
        %695 = vmatprep.subr.mxu0 0.0
        %696 = vmatpush1.msra.mxu0 0.0
        %697 = vmatprep.subr.mxu0 0.0
        %698 = vmatpush1.msra.mxu0 0.0
        %699 = vmatprep.subr.mxu0 0.0
        %700 = vmatpush1.msra.mxu0 0.0
        %701 = vmatprep.subr.mxu0 0.0
        %702 = vmatpush1.msra.mxu0 0.0
        %703 = vmatprep.subr.mxu0 0.0
        %704 = vmatpush1.msra.mxu0 0.0
        %705 = vmatprep.subr.mxu0 0.0
        %706 = vmatpush1.msra.mxu0 0.0
        %707 = vmatprep.subr.mxu0 0.0
        %708 = vmatpush1.msra.mxu0 0.0
        %709 = vmatprep.mubr.f32.mxu0 0.0
        %v710 = vand.u32 %v462, 4294901760
        %v711 = vsub.f32 %v462, %v710
        %712 = vmatmul.mubr.f32.gmra.mrb[0].mxu0 %v711
        %v713 = vpop.f32.mrb[0].mxu0
        %v714 = vadd.f32 %v632, %v713
        %v715 = vpop.f32.mrb[0].mxu0
        %716 = vmatprep.mubr.f32.mxu0 0.0
        %v717 = vand.u32 %v465, 4294901760
        %v718 = vsub.f32 %v465, %v717
        %719 = vmatmul.mubr.f32.gmra.mrb[0].mxu0 %v718
        %v720 = vpop.f32.mrb[0].mxu0
        %v721 = vadd.f32 %v638, %v720
        %v722 = vpop.f32.mrb[0].mxu0
        %723 = vdwg.mxu0
        %724 = vmatprep.subr.mxu0 0.0
        %v725 = vand.u32 %v437, 4294901760
        %726 = vmatpush1.msra.mxu0 %v725
        %727 = vmatprep.subr.mxu0 0.0
        %v728 = vand.u32 %v438, 4294901760
        %729 = vmatpush1.msra.mxu0 %v728
        %730 = vmatprep.subr.mxu0 0.0
        %731 = vmatpush1.msra.mxu0 0.0
        %732 = vmatprep.subr.mxu0 0.0
        %733 = vmatpush1.msra.mxu0 0.0
        %734 = vmatprep.subr.mxu0 0.0
        %735 = vmatpush1.msra.mxu0 0.0
        %736 = vmatprep.subr.mxu0 0.0
        %737 = vmatpush1.msra.mxu0 0.0
        %738 = vmatprep.subr.mxu0 0.0
        %739 = vmatpush1.msra.mxu0 0.0
        %740 = vmatprep.subr.mxu0 0.0
        %741 = vmatpush1.msra.mxu0 0.0
        %742 = vmatprep.subr.mxu0 0.0
        %743 = vmatpush1.msra.mxu0 0.0
        %744 = vmatprep.subr.mxu0 0.0
        %745 = vmatpush1.msra.mxu0 0.0
        %746 = vmatprep.subr.mxu0 0.0
        %747 = vmatpush1.msra.mxu0 0.0
        %748 = vmatprep.subr.mxu0 0.0
        %749 = vmatpush1.msra.mxu0 0.0
        %750 = vmatprep.subr.mxu0 0.0
        %751 = vmatpush1.msra.mxu0 0.0
        %752 = vmatprep.subr.mxu0 0.0
        %753 = vmatpush1.msra.mxu0 0.0
        %754 = vmatprep.subr.mxu0 0.0
        %755 = vmatpush1.msra.mxu0 0.0
        %756 = vmatprep.subr.mxu0 0.0
        %757 = vmatpush1.msra.mxu0 0.0
        %758 = vmatprep.subr.mxu0 0.0
        %759 = vmatpush1.msra.mxu0 0.0
        %760 = vmatprep.subr.mxu0 0.0
        %761 = vmatpush1.msra.mxu0 0.0
        %762 = vmatprep.subr.mxu0 0.0
        %763 = vmatpush1.msra.mxu0 0.0
        %764 = vmatprep.subr.mxu0 0.0
        %765 = vmatpush1.msra.mxu0 0.0
        %766 = vmatprep.subr.mxu0 0.0
        %767 = vmatpush1.msra.mxu0 0.0
        %768 = vmatprep.subr.mxu0 0.0
        %769 = vmatpush1.msra.mxu0 0.0
        %770 = vmatprep.subr.mxu0 0.0
        %771 = vmatpush1.msra.mxu0 0.0
        %772 = vmatprep.subr.mxu0 0.0
        %773 = vmatpush1.msra.mxu0 0.0
        %774 = vmatprep.subr.mxu0 0.0
        %775 = vmatpush1.msra.mxu0 0.0
        %776 = vmatprep.subr.mxu0 0.0
        %777 = vmatpush1.msra.mxu0 0.0
        %778 = vmatprep.subr.mxu0 0.0
        %779 = vmatpush1.msra.mxu0 0.0
        %780 = vmatprep.subr.mxu0 0.0
        %781 = vmatpush1.msra.mxu0 0.0
        %782 = vmatprep.subr.mxu0 0.0
        %783 = vmatpush1.msra.mxu0 0.0
        %784 = vmatprep.subr.mxu0 0.0
        %785 = vmatpush1.msra.mxu0 0.0
        %786 = vmatprep.subr.mxu0 0.0
        %787 = vmatpush1.msra.mxu0 0.0
        %788 = vmatprep.subr.mxu0 0.0
        %789 = vmatpush1.msra.mxu0 0.0
        %790 = vmatprep.mubr.f32.mxu0 0.0
        %v791 = vand.u32 %v462, 4294901760
        %v792 = vsub.f32 %v462, %v791
        %v793 = vand.u32 %v792, 4294901760
        %794 = vmatmul.mubr.f32.gmra.mrb[0].mxu0 %v793
        %v795 = vpop.f32.mrb[0].mxu0
        %v796 = vadd.f32 %v714, %v795
        %v797 = vpop.f32.mrb[0].mxu0
        %798 = vmatprep.mubr.f32.mxu0 0.0
        %v799 = vand.u32 %v465, 4294901760
        %v800 = vsub.f32 %v465, %v799
        %v801 = vand.u32 %v800, 4294901760
        %802 = vmatmul.mubr.f32.gmra.mrb[0].mxu0 %v801
        %v803 = vpop.f32.mrb[0].mxu0
        %v804 = vadd.f32 %v721, %v803
        %v805 = vpop.f32.mrb[0].mxu0
        %806 = vdwg.mxu0
        %807 = vmatprep.subr.mxu0 0.0
        %v808 = vand.u32 %v437, 4294901760
        %v809 = vsub.f32 %v437, %v808
        %v810 = vand.u32 %v809, 4294901760
        %811 = vmatpush1.msra.mxu0 %v810
        %812 = vmatprep.subr.mxu0 0.0
        %v813 = vand.u32 %v438, 4294901760
        %v814 = vsub.f32 %v438, %v813
        %v815 = vand.u32 %v814, 4294901760
        %816 = vmatpush1.msra.mxu0 %v815
        %817 = vmatprep.subr.mxu0 0.0
        %818 = vmatpush1.msra.mxu0 0.0
        %819 = vmatprep.subr.mxu0 0.0
        %820 = vmatpush1.msra.mxu0 0.0
        %821 = vmatprep.subr.mxu0 0.0
        %822 = vmatpush1.msra.mxu0 0.0
        %823 = vmatprep.subr.mxu0 0.0
        %824 = vmatpush1.msra.mxu0 0.0
        %825 = vmatprep.subr.mxu0 0.0
        %826 = vmatpush1.msra.mxu0 0.0
        %827 = vmatprep.subr.mxu0 0.0
        %828 = vmatpush1.msra.mxu0 0.0
        %829 = vmatprep.subr.mxu0 0.0
        %830 = vmatpush1.msra.mxu0 0.0
        %831 = vmatprep.subr.mxu0 0.0
        %832 = vmatpush1.msra.mxu0 0.0
        %833 = vmatprep.subr.mxu0 0.0
        %834 = vmatpush1.msra.mxu0 0.0
        %835 = vmatprep.subr.mxu0 0.0
        %836 = vmatpush1.msra.mxu0 0.0
        %837 = vmatprep.subr.mxu0 0.0
        %838 = vmatpush1.msra.mxu0 0.0
        %839 = vmatprep.subr.mxu0 0.0
        %840 = vmatpush1.msra.mxu0 0.0
        %841 = vmatprep.subr.mxu0 0.0
        %842 = vmatpush1.msra.mxu0 0.0
        %843 = vmatprep.subr.mxu0 0.0
        %844 = vmatpush1.msra.mxu0 0.0
        %845 = vmatprep.subr.mxu0 0.0
        %846 = vmatpush1.msra.mxu0 0.0
        %847 = vmatprep.subr.mxu0 0.0
        %848 = vmatpush1.msra.mxu0 0.0
        %849 = vmatprep.subr.mxu0 0.0
        %850 = vmatpush1.msra.mxu0 0.0
        %851 = vmatprep.subr.mxu0 0.0
        %852 = vmatpush1.msra.mxu0 0.0
        %853 = vmatprep.subr.mxu0 0.0
        %854 = vmatpush1.msra.mxu0 0.0
        %855 = vmatprep.subr.mxu0 0.0
        %856 = vmatpush1.msra.mxu0 0.0
        %857 = vmatprep.subr.mxu0 0.0
        %858 = vmatpush1.msra.mxu0 0.0
        %859 = vmatprep.subr.mxu0 0.0
        %860 = vmatpush1.msra.mxu0 0.0
        %861 = vmatprep.subr.mxu0 0.0
        %862 = vmatpush1.msra.mxu0 0.0
        %863 = vmatprep.subr.mxu0 0.0
        %864 = vmatpush1.msra.mxu0 0.0
        %865 = vmatprep.subr.mxu0 0.0
        %866 = vmatpush1.msra.mxu0 0.0
        %867 = vmatprep.subr.mxu0 0.0
        %868 = vmatpush1.msra.mxu0 0.0
        %869 = vmatprep.subr.mxu0 0.0
        %870 = vmatpush1.msra.mxu0 0.0
        %871 = vmatprep.subr.mxu0 0.0
        %872 = vmatpush1.msra.mxu0 0.0
        %873 = vmatprep.subr.mxu0 0.0
        %874 = vmatpush1.msra.mxu0 0.0
        %875 = vmatprep.subr.mxu0 0.0
        %876 = vmatpush1.msra.mxu0 0.0
        %877 = vmatprep.mubr.f32.mxu0 0.0
        %v878 = vand.u32 %v462, 4294901760
        %879 = vmatmul.mubr.f32.gmra.mrb[0].mxu0 %v878
        %v880 = vpop.f32.mrb[0].mxu0
        %v881 = vadd.f32 %v796, %v880
        %v882 = vpop.f32.mrb[0].mxu0
        %883 = vmatprep.mubr.f32.mxu0 0.0
        %v884 = vand.u32 %v465, 4294901760
        %885 = vmatmul.mubr.f32.gmra.mrb[0].mxu0 %v884
        %v886 = vpop.f32.mrb[0].mxu0
        %v887 = vadd.f32 %v804, %v886
        %v888 = vpop.f32.mrb[0].mxu0
        %889 = vdwg.mxu0
        %890 = vmatprep.subr.mxu0 0.0
        %v891 = vand.u32 %v437, 4294901760
        %892 = vmatpush1.msra.mxu0 %v891
        %893 = vmatprep.subr.mxu0 0.0
        %v894 = vand.u32 %v438, 4294901760
        %895 = vmatpush1.msra.mxu0 %v894
        %896 = vmatprep.subr.mxu0 0.0
        %897 = vmatpush1.msra.mxu0 0.0
        %898 = vmatprep.subr.mxu0 0.0
        %899 = vmatpush1.msra.mxu0 0.0
        %900 = vmatprep.subr.mxu0 0.0
        %901 = vmatpush1.msra.mxu0 0.0
        %902 = vmatprep.subr.mxu0 0.0
        %903 = vmatpush1.msra.mxu0 0.0
        %904 = vmatprep.subr.mxu0 0.0
        %905 = vmatpush1.msra.mxu0 0.0
        %906 = vmatprep.subr.mxu0 0.0
        %907 = vmatpush1.msra.mxu0 0.0
        %908 = vmatprep.subr.mxu0 0.0
        %909 = vmatpush1.msra.mxu0 0.0
        %910 = vmatprep.subr.mxu0 0.0
        %911 = vmatpush1.msra.mxu0 0.0
        %912 = vmatprep.subr.mxu0 0.0
        %913 = vmatpush1.msra.mxu0 0.0
        %914 = vmatprep.subr.mxu0 0.0
        %915 = vmatpush1.msra.mxu0 0.0
        %916 = vmatprep.subr.mxu0 0.0
        %917 = vmatpush1.msra.mxu0 0.0
        %918 = vmatprep.subr.mxu0 0.0
        %919 = vmatpush1.msra.mxu0 0.0
        %920 = vmatprep.subr.mxu0 0.0
        %921 = vmatpush1.msra.mxu0 0.0
        %922 = vmatprep.subr.mxu0 0.0
        %923 = vmatpush1.msra.mxu0 0.0
        %924 = vmatprep.subr.mxu0 0.0
        %925 = vmatpush1.msra.mxu0 0.0
        %926 = vmatprep.subr.mxu0 0.0
        %927 = vmatpush1.msra.mxu0 0.0
        %928 = vmatprep.subr.mxu0 0.0
        %929 = vmatpush1.msra.mxu0 0.0
        %930 = vmatprep.subr.mxu0 0.0
        %931 = vmatpush1.msra.mxu0 0.0
        %932 = vmatprep.subr.mxu0 0.0
        %933 = vmatpush1.msra.mxu0 0.0
        %934 = vmatprep.subr.mxu0 0.0
        %935 = vmatpush1.msra.mxu0 0.0
        %936 = vmatprep.subr.mxu0 0.0
        %937 = vmatpush1.msra.mxu0 0.0
        %938 = vmatprep.subr.mxu0 0.0
        %939 = vmatpush1.msra.mxu0 0.0
        %940 = vmatprep.subr.mxu0 0.0
        %941 = vmatpush1.msra.mxu0 0.0
        %942 = vmatprep.subr.mxu0 0.0
        %943 = vmatpush1.msra.mxu0 0.0
        %944 = vmatprep.subr.mxu0 0.0
        %945 = vmatpush1.msra.mxu0 0.0
        %946 = vmatprep.subr.mxu0 0.0
        %947 = vmatpush1.msra.mxu0 0.0
        %948 = vmatprep.subr.mxu0 0.0
        %949 = vmatpush1.msra.mxu0 0.0
        %950 = vmatprep.subr.mxu0 0.0
        %951 = vmatpush1.msra.mxu0 0.0
        %952 = vmatprep.subr.mxu0 0.0
        %953 = vmatpush1.msra.mxu0 0.0
        %954 = vmatprep.subr.mxu0 0.0
        %955 = vmatpush1.msra.mxu0 0.0
        %956 = vmatprep.mubr.f32.mxu0 0.0
        %v957 = vand.u32 %v462, 4294901760
        %958 = vmatmul.mubr.f32.gmra.mrb[0].mxu0 %v957
        %v959 = vpop.f32.mrb[0].mxu0
        %v960 = vadd.f32 %v881, %v959
        %v961 = vpop.f32.mrb[0].mxu0
        %962 = vmatprep.mubr.f32.mxu0 0.0
        %v963 = vand.u32 %v465, 4294901760
        %964 = vmatmul.mubr.f32.gmra.mrb[0].mxu0 %v963
        %v965 = vpop.f32.mrb[0].mxu0
        %v966 = vadd.f32 %v887, %v965
        %v967 = vpop.f32.mrb[0].mxu0
        %968 = vdwg.mxu0
        %vm969 = vcmask 523264
        %970 = vst.msk [vmem:[%s368] sm:$0xff] %vm969, %v960
        %971 = vst.msk [vmem:[%s368 + $0x8] sm:$0xff] %vm969, %v966
        %vm972 = vcmask 523271
        %973 = vst.msk [vmem:[#allocation2 - $0x7] sm:$0x80] %vm972, %v966
        %s974 = sand.u32 %s181, 1
        %s975 = scalar_lea.sflag [#allocation5], %s974
        %s976 = sand.u32 %s181, 1
        %s977 = smul.addr %s976, 16
        %s978 = scalar_lea.vmem [#allocation6], %s977
        // Predicated region
        $region41: #{tpu_custom_call.1} parent=31 // pred_check
          %p979 = pneg %p191
        $region42: #{tpu_custom_call.1} parent=31 // pred_check_branch
          %981 = sbr.rel (%p979) target = $region44
        $region43: #{tpu_custom_call.1} parent=31 // pred_region
          %s982 = smul.u32 2, %s27
          %s984 = ssub.s32 256, 256
          %985 = vsyncadd %s975, %s984
          %s986 = sadd.s32 %s26, %s982
          %s987 = smul.addr %s25, 2
          %s988 = sadd.s32 %s986, %s987
          %s989 = smul.addr %s988, 128
          %s990 = scalar_lea.hbm %s3, %s989
          %s991 = sshll.u32 %s978, 4
          %s992 = int_to_ptr.vmem [resolvable:$true] %s991
          %997 = dma.vmem_to_hbm [thread:$0]  %s992, 256, %s990, %s975, 128, 128, 8
        $region44: #{tpu_custom_call.1} parent=31 // pred_fallthru
          _
      $region32: #{tpu_custom_call.1} parent=5 // pred_fallthru
        _
      %p998 = scmp.le.s32.totalorder 2, %s15
      // Predicated region
      $region45: #{tpu_custom_call.1} parent=5 // pred_check
        %p999 = pneg %p998
      $region46: #{tpu_custom_call.1} parent=5 // pred_check_branch
        %1001 = sbr.rel (%p999) target = $region48
      $region47: #{tpu_custom_call.1} parent=5 // pred_region
        %s1002 = ssub.s32 %s15, 2
        // Predicated region
        $region49: #{tpu_custom_call.1} parent=47 // pred_check
          %p1003 = pneg %p197
        $region50: #{tpu_custom_call.1} parent=47 // pred_check_branch
          %1005 = sbr.rel (%p1003) target = $region52
        $region51: #{tpu_custom_call.1} parent=47 // pred_region
          %s1006 = sand.u32 %s182, 1
          %s1007 = scalar_lea.sflag [#allocation5], %s1006
          %s1008 = sand.u32 %s182, 1
          %s1009 = smul.addr %s1008, 16
          %s1010 = scalar_lea.vmem [#allocation6], %s1009
          %1011 = dma.done %s1007, 256
        $region52: #{tpu_custom_call.1} parent=47 // pred_fallthru
          _
      $region48: #{tpu_custom_call.1} parent=5 // pred_fallthru
        _
    $region6: #{tpu_custom_call.1} parent=1 // loop_footer
      %s19 = sadd.s32 1, %s15
    $region7: #{tpu_custom_call.1} parent=1 // loop_footer_branch
      %14 = sbr.rel target = $region3
    $region8: #{tpu_custom_call.1} parent=1 // loop_exit
      _
    %1012 = vsyncpa [#allocation4], 1
    %s1013 = scalar_lea.sflag [#allocation4], 1
    %1014 = vsyncpa %s1013, 1
    %1015 = vsyncpa [#allocation5], 1
    %s1016 = scalar_lea.sflag [#allocation5], 1
    %1017 = vsyncpa %s1016, 1

</llo_original>
